<compile_context>
chip_gen: v7x
topology: tpu7x:2x2x1
jax: 0.10.0
libtpu: 0.0.40
codegen_flags: <defaults>
</compile_context>

<pallas_src>
import functools

import jax
import jax.numpy as jnp
from jax.experimental import pallas as pl
from jax.experimental.pallas import tpu as pltpu


TR_TARGET = 64                       # target rows per block (sublane axis)
TD_MAX = 8192                        # cap on lanes per block (keeps unroll short)
BLOCK_BYTES_TARGET = 1 << 20         # ~1 MiB per input block -> near HBM roofline
VMEM_LIMIT_BYTES = 48 * 1024 * 1024  # fits v7x's 64 MiB physical; > v5e's 16 MiB default


def _round_up(x, m):
    return -(-x // m) * m


def _largest_aligned_divisor(total, cap, align):
    """Largest multiple of `align` that divides `total` and is <= cap.

    Assumes `align` divides `total` and cap >= align.
    """
    cap = min(cap, total)
    m = max(align, cap - cap % align)
    while m > align:
        if total % m == 0:
            return m
        m -= align
    return align


def _nmse_stats_kernel(shift_ref, x_ref, t_ref, sq_ref, ts_ref, tsq_ref, *,
                       num_lane_chunks):
    """Accumulates lane-wide partial sums of (x-t)^2, (t-c), (t-c)^2.

    Grid: (row_tiles ['parallel'], feature_tiles ['arbitrary']).
    Outputs are (tr, 128) f32 blocks that stay resident across the feature
    axis (accumulator pattern); all cross-lane reduction is done in the
    wrapper epilogue.
    """
    j = pl.program_id(1)

    @pl.when(j == 0)
    def _init():
        sq_ref[...] = jnp.zeros_like(sq_ref)
        ts_ref[...] = jnp.zeros_like(ts_ref)
        tsq_ref[...] = jnp.zeros_like(tsq_ref)

    c = shift_ref[0]  # scalar shift (SMEM) for stable, shift-invariant variance

    # Lane-parallel accumulation: fold the td lanes into 128-wide partials with
    # pure VPU adds (no per-step XLU cross-lane reduce). Chunk slices start at
    # multiples of 128, so they map straight onto vreg columns.
    sq_p = ts_p = tsq_p = None
    for k in range(num_lane_chunks):
        sl = slice(k * 128, (k + 1) * 128)
        xk = x_ref[:, sl].astype(jnp.float32)   # widen in-kernel (bf16 stays 2B in HBM)
        tk = t_ref[:, sl].astype(jnp.float32)
        dk = xk - tk
        tc = tk - c
        if k == 0:
            sq_p = dk * dk
            ts_p = tc
            tsq_p = tc * tc
        else:
            sq_p = sq_p + dk * dk
            ts_p = ts_p + tc
            tsq_p = tsq_p + tc * tc

    sq_ref[...] += sq_p
    ts_ref[...] += ts_p
    tsq_ref[...] += tsq_p


@functools.partial(jax.jit, static_argnames=("keep_batch",))
def nmse_loss(inp, tgt, keep_batch=False):
    """Pallas NMSE loss. inp/tgt are NCHW (or any >=2-D) arrays of equal shape."""
    assert inp.shape == tgt.shape
    n = inp.shape[0]
    d = 1
    for s in inp.shape[1:]:
        d *= s

    itemsize = int(jnp.dtype(inp.dtype).itemsize)

    # ---- sublane packing: view each sample as r_pack rows so small batches
    # fill the (8,128) vreg sublanes. Per-sample sums are order independent.
    r_pack = 1
    if n < 8:
        for cand in (8, 4, 2):
            if d % cand == 0:
                r_pack = cand
                break
    rows = n * r_pack
    dr = d // r_pack

    # ---- row tiling (aligned for the dtype's sublane packing; prefer >=2 row
    # tiles so v7x's two TensorCores both get work on the 'parallel' axis).
    row_align = 8 * max(1, 4 // itemsize)          # 8 f32, 16 bf16, 32 int8/fp8
    rows_pad = _round_up(rows, row_align)
    tr_cap = rows_pad // 2 if rows_pad >= 2 * row_align else rows_pad
    tr_cap = max(row_align, min(TR_TARGET, tr_cap - tr_cap % row_align))
    tr = _largest_aligned_divisor(rows_pad, tr_cap, row_align)

    # ---- feature tiling: big lane-dense tiles sized for ~1 MiB blocks.
    td_cap = (BLOCK_BYTES_TARGET // (tr * itemsize)) // 128 * 128
    td_cap = int(min(TD_MAX, max(128, td_cap)))
    dr_ceil = _round_up(dr, 128)
    td = _largest_aligned_divisor(dr_ceil, td_cap, 128)
    if td < min(512, td_cap) and dr_ceil >= 2048:
        # Awkward divisor structure: pad the feature dim rather than running
        # many tiny 128-lane grid steps (and never fall back to one huge block).
        td = min(td_cap, 2048)
    dr_pad = _round_up(dr, td)

    # ---- flatten NCHW -> (rows, dr); pure metadata under jit, no dtype cast.
    x2 = inp.reshape(rows, dr)
    t2 = tgt.reshape(rows, dr)

    # Shift constant (= first target element). Variance is shift invariant, so
    # subtracting it only improves conditioning; it is also the pad value so
    # padded elements contribute exactly 0 to every accumulated statistic.
    shift = t2[0, 0]
    shift_smem = shift.astype(jnp.float32).reshape(1)

    pad_r = rows_pad - rows
    pad_c = dr_pad - dr
    if pad_c:
        x2 = jnp.concatenate(
            [x2, jnp.full((rows, pad_c), shift, dtype=x2.dtype)], axis=1)
        t2 = jnp.concatenate(
            [t2, jnp.full((rows, pad_c), shift, dtype=t2.dtype)], axis=1)
    if pad_r:
        x2 = jnp.concatenate(
            [x2, jnp.full((pad_r, dr_pad), shift, dtype=x2.dtype)], axis=0)
        t2 = jnp.concatenate(
            [t2, jnp.full((pad_r, dr_pad), shift, dtype=t2.dtype)], axis=0)

    grid = (rows_pad // tr, dr_pad // td)
    num_lane_chunks = td // 128

    kernel = functools.partial(_nmse_stats_kernel,
                               num_lane_chunks=num_lane_chunks)

    acc_sds = jax.ShapeDtypeStruct((rows_pad, 128), jnp.float32)
    acc_spec = pl.BlockSpec((tr, 128), lambda i, j: (i, 0))   # resident over j
    data_spec = pl.BlockSpec((tr, td), lambda i, j: (i, j))

    cost = pl.CostEstimate(
        flops=8 * rows_pad * dr_pad,
        transcendentals=0,
        bytes_accessed=2 * rows_pad * dr_pad * itemsize + 3 * rows_pad * 128 * 4,
    )

    sq_rows, ts_rows, tsq_rows = pl.pallas_call(
        kernel,
        out_shape=(acc_sds, acc_sds, acc_sds),
        grid_spec=pltpu.PrefetchScalarGridSpec(
            num_scalar_prefetch=0,
            grid=grid,
            in_specs=[
                pl.BlockSpec(memory_space=pltpu.MemorySpace.SMEM),  # shift scalar
                data_spec,                                          # input
                data_spec,                                          # target
            ],
            out_specs=[acc_spec, acc_spec, acc_spec],
        ),
        compiler_params=pltpu.CompilerParams(
            dimension_semantics=("parallel", "arbitrary"),
            vmem_limit_bytes=VMEM_LIMIT_BYTES,
        ),
        cost_estimate=cost,
    )(shift_smem, x2, t2)

    # ---- tiny epilogue in plain jnp (one cross-lane reduce per statistic).
    sq_s = jnp.sum(sq_rows[:rows].reshape(n, -1), axis=1)     # sum (x-t)^2
    ts_s = jnp.sum(ts_rows[:rows].reshape(n, -1), axis=1)     # sum (t-c)
    tsq_s = jnp.sum(tsq_rows[:rows].reshape(n, -1), axis=1)   # sum (t-c)^2

    d_f = jnp.float32(d)
    if keep_batch:
        mse = sq_s / d_f
        var = (tsq_s - ts_s * ts_s / d_f) / (d_f - 1.0)       # unbiased, shifted
        return mse / var                                      # (N,)
    total = jnp.float32(n * d)
    mse = jnp.sum(sq_s) / total
    s = jnp.sum(ts_s)
    ss = jnp.sum(tsq_s)
    var = (ss - s * s / total) / (total - 1.0)
    # Note: like torch, no guard against var == 0 (constant target -> inf/nan).
    return mse / var                                          # scalar


def _ref_nmse(inp, tgt, keep_batch=False):
    """Pure-JAX reference mirroring torch semantics (unbiased var)."""
    if not keep_batch:
        mse = jnp.mean((inp - tgt) ** 2)
        var = jnp.var(tgt, ddof=1)
        return mse / var
    axes = tuple(range(1, inp.ndim))
    mse = jnp.mean((inp - tgt) ** 2, axis=axes)
    var = jnp.var(tgt, axis=axes, ddof=1)
    return mse / var


if __name__ == "__main__":
    key = jax.random.PRNGKey(0)
    k1, k2, k3, k4 = jax.random.split(key, 4)

    # Primary case: NCHW layout as used by the torch module.
    N, C, H, W = 2, 4, 16, 16
    x = jax.random.normal(k1, (N, C, H, W), dtype=jnp.float32)
    # Non-zero target mean exercises the shifted (stable) variance path.
    t = jax.random.normal(k2, (N, C, H, W), dtype=jnp.float32) + 3.0

    out_scalar = jax.block_until_ready(nmse_loss(x, t, keep_batch=False))
    out_batch = jax.block_until_ready(nmse_loss(x, t, keep_batch=True))
    ref_scalar = _ref_nmse(x, t, keep_batch=False)
    ref_batch = _ref_nmse(x, t, keep_batch=True)

    assert out_batch.shape == (N,)
    assert jnp.allclose(out_scalar, ref_scalar, rtol=1e-4, atol=1e-6)
    assert jnp.allclose(out_batch, ref_batch, rtol=1e-4, atol=1e-6)

    # Secondary case: odd sizes + bf16 exercises the padding fallback, row
    # padding, and the in-kernel upcast (no f32 copies in HBM).
    N2, C2, H2, W2 = 3, 3, 5, 7
    xb = jax.random.normal(k3, (N2, C2, H2, W2), dtype=jnp.bfloat16)
    tb = jax.random.normal(k4, (N2, C2, H2, W2), dtype=jnp.bfloat16)
    out_b = jax.block_until_ready(nmse_loss(xb, tb, keep_batch=True))
    out_b_s = jax.block_until_ready(nmse_loss(xb, tb, keep_batch=False))
    ref_b = _ref_nmse(xb.astype(jnp.float32), tb.astype(jnp.float32),
                      keep_batch=True)
    ref_b_s = _ref_nmse(xb.astype(jnp.float32), tb.astype(jnp.float32),
                        keep_batch=False)
    assert out_b.shape == (N2,)
    assert jnp.allclose(out_b, ref_b, rtol=1e-3, atol=1e-4)
    assert jnp.allclose(out_b_s, ref_b_s, rtol=1e-3, atol=1e-4)

    print("KERNEL_OK")
</pallas_src>

<mosaic_0001>
module attributes {stable_mosaic.version = 11 : i64} {
  func.func @_nmse_stats_kernel(%arg0: i32, %arg1: i32, %arg2: memref<1xf32, #tpu.memory_space<smem>>, %arg3: memref<8x128xf32, #tpu.memory_space<vmem>>, %arg4: memref<8x128xf32, #tpu.memory_space<vmem>>, %arg5: memref<8x128xf32, #tpu.memory_space<vmem>>, %arg6: memref<8x128xf32, #tpu.memory_space<vmem>>, %arg7: memref<8x128xf32, #tpu.memory_space<vmem>>) attributes {dimension_semantics = [#tpu.dimension_semantics<parallel>, #tpu.dimension_semantics<arbitrary>], iteration_bounds = array<i64: 2, 1>, scalar_prefetch = 0 : i64, scratch_operands = 0 : i64, tpu.core_type = #tpu.core_type<tc>, window_params = [{transform_indices = @transform_0, window_bounds = array<i64: 1>}, {transform_indices = @transform_1, window_bounds = array<i64: 8, 128>}, {transform_indices = @transform_2, window_bounds = array<i64: 8, 128>}, {transform_indices = @transform_3, window_bounds = array<i64: 8, 128>}, {transform_indices = @transform_4, window_bounds = array<i64: 8, 128>}, {transform_indices = @transform_5, window_bounds = array<i64: 8, 128>}]} {
    %c0_i32 = arith.constant 0 : i32
    %0 = arith.cmpi eq, %arg1, %c0_i32 : i32
    %1 = arith.extui %0 : i1 to i32
    %c0_i32_0 = arith.constant 0 : i32
    %2 = arith.cmpi ne, %1, %c0_i32_0 : i32
    scf.if %2 {
      %cst = arith.constant 0.000000e+00 : f32
      %20 = vector.broadcast %cst : f32 to vector<8x128xf32>
      %c0_17 = arith.constant 0 : index
      %c0_18 = arith.constant 0 : index
      %21 = vector.load %arg5[%c0_17, %c0_18] : memref<8x128xf32, #tpu.memory_space<vmem>>, vector<8x128xf32>
      tpu.vector_store %arg5[%c0_17, %c0_18], %20 {strides = array<i32>} : memref<8x128xf32, #tpu.memory_space<vmem>>, vector<8x128xf32>,
      %cst_19 = arith.constant 0.000000e+00 : f32
      %22 = vector.broadcast %cst_19 : f32 to vector<8x128xf32>
      %c0_20 = arith.constant 0 : index
      %c0_21 = arith.constant 0 : index
      %23 = vector.load %arg6[%c0_20, %c0_21] : memref<8x128xf32, #tpu.memory_space<vmem>>, vector<8x128xf32>
      tpu.vector_store %arg6[%c0_20, %c0_21], %22 {strides = array<i32>} : memref<8x128xf32, #tpu.memory_space<vmem>>, vector<8x128xf32>,
      %cst_22 = arith.constant 0.000000e+00 : f32
      %24 = vector.broadcast %cst_22 : f32 to vector<8x128xf32>
      %c0_23 = arith.constant 0 : index
      %c0_24 = arith.constant 0 : index
      %25 = vector.load %arg7[%c0_23, %c0_24] : memref<8x128xf32, #tpu.memory_space<vmem>>, vector<8x128xf32>
      tpu.vector_store %arg7[%c0_23, %c0_24], %24 {strides = array<i32>} : memref<8x128xf32, #tpu.memory_space<vmem>>, vector<8x128xf32>,
    } else {
    }
    %c0 = arith.constant 0 : index
    %3 = memref.load %arg2[%c0] : memref<1xf32, #tpu.memory_space<smem>>
    %c0_1 = arith.constant 0 : index
    %c0_2 = arith.constant 0 : index
    %4 = vector.load %arg3[%c0_1, %c0_2] : memref<8x128xf32, #tpu.memory_space<vmem>>, vector<8x128xf32>
    %c0_3 = arith.constant 0 : index
    %c0_4 = arith.constant 0 : index
    %5 = vector.load %arg4[%c0_3, %c0_4] : memref<8x128xf32, #tpu.memory_space<vmem>>, vector<8x128xf32>
    %6 = arith.subf %4, %5 : vector<8x128xf32>
    %7 = vector.broadcast %3 : f32 to vector<8x128xf32>
    %8 = arith.subf %5, %7 : vector<8x128xf32>
    %9 = arith.mulf %6, %6 : vector<8x128xf32>
    %10 = arith.mulf %8, %8 : vector<8x128xf32>
    %c0_5 = arith.constant 0 : index
    %c0_6 = arith.constant 0 : index
    %11 = vector.load %arg5[%c0_5, %c0_6] : memref<8x128xf32, #tpu.memory_space<vmem>>, vector<8x128xf32>
    %12 = arith.addf %11, %9 : vector<8x128xf32>
    %c0_7 = arith.constant 0 : index
    %c0_8 = arith.constant 0 : index
    %13 = vector.load %arg5[%c0_7, %c0_8] : memref<8x128xf32, #tpu.memory_space<vmem>>, vector<8x128xf32>
    tpu.vector_store %arg5[%c0_7, %c0_8], %12 {strides = array<i32>} : memref<8x128xf32, #tpu.memory_space<vmem>>, vector<8x128xf32>,
    %c0_9 = arith.constant 0 : index
    %c0_10 = arith.constant 0 : index
    %14 = vector.load %arg6[%c0_9, %c0_10] : memref<8x128xf32, #tpu.memory_space<vmem>>, vector<8x128xf32>
    %15 = arith.addf %14, %8 : vector<8x128xf32>
    %c0_11 = arith.constant 0 : index
    %c0_12 = arith.constant 0 : index
    %16 = vector.load %arg6[%c0_11, %c0_12] : memref<8x128xf32, #tpu.memory_space<vmem>>, vector<8x128xf32>
    tpu.vector_store %arg6[%c0_11, %c0_12], %15 {strides = array<i32>} : memref<8x128xf32, #tpu.memory_space<vmem>>, vector<8x128xf32>,
    %c0_13 = arith.constant 0 : index
    %c0_14 = arith.constant 0 : index
    %17 = vector.load %arg7[%c0_13, %c0_14] : memref<8x128xf32, #tpu.memory_space<vmem>>, vector<8x128xf32>
    %18 = arith.addf %17, %10 : vector<8x128xf32>
    %c0_15 = arith.constant 0 : index
    %c0_16 = arith.constant 0 : index
    %19 = vector.load %arg7[%c0_15, %c0_16] : memref<8x128xf32, #tpu.memory_space<vmem>>, vector<8x128xf32>
    tpu.vector_store %arg7[%c0_15, %c0_16], %18 {strides = array<i32>} : memref<8x128xf32, #tpu.memory_space<vmem>>, vector<8x128xf32>,
    return
  }
  func.func @transform_0(%arg0: i32, %arg1: i32) -> i32 {
    %c0_i32 = arith.constant 0 : i32
    %c0_i32_0 = arith.constant 0 : i32
    return %c0_i32 : i32
  }
  func.func @transform_1(%arg0: i32, %arg1: i32) -> (i32, i32) {
    %c0_i32 = arith.constant 0 : i32
    return %arg0, %arg1 : i32, i32
  }
  func.func @transform_2(%arg0: i32, %arg1: i32) -> (i32, i32) {
    %c0_i32 = arith.constant 0 : i32
    return %arg0, %arg1 : i32, i32
  }
  func.func @transform_3(%arg0: i32, %arg1: i32) -> (i32, i32) {
    %c0_i32 = arith.constant 0 : i32
    %c0_i32_0 = arith.constant 0 : i32
    return %arg0, %c0_i32 : i32, i32
  }
  func.func @transform_4(%arg0: i32, %arg1: i32) -> (i32, i32) {
    %c0_i32 = arith.constant 0 : i32
    %c0_i32_0 = arith.constant 0 : i32
    return %arg0, %c0_i32 : i32, i32
  }
  func.func @transform_5(%arg0: i32, %arg1: i32) -> (i32, i32) {
    %c0_i32 = arith.constant 0 : i32
    %c0_i32_0 = arith.constant 0 : i32
    return %arg0, %c0_i32 : i32, i32
  }
}

</mosaic_0001>

<llo_original>
// kernel: nmse_loss.1
$region0: #{nmse_loss.1}
  #allocation0 [shape = 'u32[]', space=smem, size = 0x4, offset = 0x4, fixed_abs, tag = 'smem constant byte address 0x4 - core index']
  #allocation1 [shape = 'u32[144,128]{1,0:T(1,128)}', space=vmem, size = 0x12000, scoped, tag = 'internal scratch']
  #allocation2 [shape = 'f32[1]{0:T(128)S(6)}', space=smem, size = 0x200, scoped, tag = 'scoped memory for nmse_loss.1']
  %s0 = inlined_call_operand.<no memory space> [shape: f32[1], index: 0, kind: input, shape index: {}]
  %s1 = inlined_call_operand.vmem [shape: f32[16,128], index: 1, kind: input, shape index: {}]
  %s2 = inlined_call_operand.vmem [shape: f32[16,128], index: 2, kind: input, shape index: {}]
  %s3 = inlined_call_operand.vmem [shape: f32[16,128], index: 3, kind: output, shape index: {0}]
  %s4 = inlined_call_operand.vmem [shape: f32[16,128], index: 4, kind: output, shape index: {1}]
  %s5 = inlined_call_operand.vmem [shape: f32[16,128], index: 5, kind: output, shape index: {2}]
  %6 = xla_tuple %s3, %s4, %s5
  %s7 = sld [smem:[#allocation0]]
  $region65: #{nmse_loss.1} parent=0
    _
  %s9 = ssub.s32 1, %s7
  %s10 = scalar_select 0, %s9, %s7
  %11 = sst [smem:[#allocation2]] %s0
  loop: start=0, step=1, limit=4
  $region2: #{nmse_loss.1} parent=0 // loop_pre_header
    _
  $region3: #{nmse_loss.1} parent=0 // loop_header
    %s13 = sphi 0, %s17
    %p14 = scmp.ge.s32.totalorder %s13, 4
    %s20 = sphi 0, %s32
    %s21 = sphi 0, %s28
    %s22 = sphi 0, %s20
    %s23 = sphi 0, %s21
    %s24 = sphi 0, %s22
    %s25 = sphi 0, %s23
    %s33 = sphi 0, %s33
    %s35 = sphi 0, %s33
    %s36 = sphi 0, %s35
    %s50 = sphi 0, %s36
    %s58 = sphi 0, %s60
    %s61 = sphi 0, %s58
    %s62 = sphi 0, %s61
    %s78 = sphi 0, %s62
    %s86 = sphi 0, %s88
    %s89 = sphi 0, %s86
    %s90 = sphi 0, %s89
    %s106 = sphi 0, %s90
    %s112 = sphi 0, %s114
    %s115 = sphi 0, %s112
    %s116 = sphi 0, %s115
    %s132 = sphi 0, %s116
    %s138 = sphi 0, %s140
    %s141 = sphi 0, %s138
    %s142 = sphi 0, %s141
    %s158 = sphi 0, %s142
    %s164 = sphi 0, %s166
    %s167 = sphi 0, %s164
    %s168 = sphi 0, %s167
    %s184 = sphi 0, %s168
  $region4: #{nmse_loss.1} parent=0 // loop_header_branch
    %16 = sbr.rel (%p14) target = $region8
  $region5: #{nmse_loss.1} parent=0 // loop_body
    %s18 = ssub.s32 %s13, 1
    %s19 = ssub.s32 %s13, 2
    %s26 = sadd.s32 1, %s21
    %p27 = scmp.ge.s32.totalorder %s26, 1
    %s28 = scalar_select %p27, 0, %s26
    %s29 = sadd.s32 1, %s20
    %s30 = scalar_select %p27, %s29, %s20
    %p31 = scmp.ge.s32.totalorder %s30, 2
    %s32 = scalar_select %p31, 0, %s30
    %s34 = sadd.s32 %s33, 1
    %p37 = scmp.eq.s32.totalorder %s13, 1
    %p38 = scmp.ne.s32.totalorder %s33, %s35
    %p39 = scmp.eq.s32.totalorder %s13, 0
    %p40 = por %p38, %p39
    %p41 = scmp.ne.s32.totalorder %s33, %s35
    %p42 = scmp.eq.s32.totalorder %s18, 1
    %p43 = por %p41, %p42
    %p44 = scmp.ne.s32.totalorder %s35, %s36
    %p45 = scmp.eq.s32.totalorder %s18, 0
    %p46 = por %p44, %p45
    %p47 = scmp.ne.s32.totalorder %s35, %s36
    %p48 = scmp.eq.s32.totalorder %s19, 1
    %p49 = por %p47, %p48
    %p51 = scmp.ne.s32.totalorder %s36, %s50
    %p52 = scmp.eq.s32.totalorder %s19, 0
    %p53 = por %p51, %p52
    %s54 = ssub.s32 %s20, %s32
    %s55 = ssub.s32 %s21, %s28
    %s56 = sor.u32 %s54, %s55
    %p57 = scmp.eq.s32.totalorder %s56, 0
    %s59 = sadd.s32 %s58, 1
    %s60 = scalar_select %p57, %s58, %s59
    %p63 = pneg %p57
    %p64 = scmp.eq.s32.totalorder %s13, 1
    %p65 = por %p63, %p64
    %p66 = scmp.ne.s32.totalorder %s58, %s61
    %p67 = scmp.eq.s32.totalorder %s13, 0
    %p68 = por %p66, %p67
    %p69 = scmp.ne.s32.totalorder %s58, %s61
    %p70 = scmp.eq.s32.totalorder %s18, 1
    %p71 = por %p69, %p70
    %p72 = scmp.ne.s32.totalorder %s61, %s62
    %p73 = scmp.eq.s32.totalorder %s18, 0
    %p74 = por %p72, %p73
    %p75 = scmp.ne.s32.totalorder %s61, %s62
    %p76 = scmp.eq.s32.totalorder %s19, 1
    %p77 = por %p75, %p76
    %p79 = scmp.ne.s32.totalorder %s62, %s78
    %p80 = scmp.eq.s32.totalorder %s19, 0
    %p81 = por %p79, %p80
    %s82 = ssub.s32 %s20, %s32
    %s83 = ssub.s32 %s21, %s28
    %s84 = sor.u32 %s82, %s83
    %p85 = scmp.eq.s32.totalorder %s84, 0
    %s87 = sadd.s32 %s86, 1
    %s88 = scalar_select %p85, %s86, %s87
    %p91 = pneg %p85
    %p92 = scmp.eq.s32.totalorder %s13, 1
    %p93 = por %p91, %p92
    %p94 = scmp.ne.s32.totalorder %s86, %s89
    %p95 = scmp.eq.s32.totalorder %s13, 0
    %p96 = por %p94, %p95
    %p97 = scmp.ne.s32.totalorder %s86, %s89
    %p98 = scmp.eq.s32.totalorder %s18, 1
    %p99 = por %p97, %p98
    %p100 = scmp.ne.s32.totalorder %s89, %s90
    %p101 = scmp.eq.s32.totalorder %s18, 0
    %p102 = por %p100, %p101
    %p103 = scmp.ne.s32.totalorder %s89, %s90
    %p104 = scmp.eq.s32.totalorder %s19, 1
    %p105 = por %p103, %p104
    %p107 = scmp.ne.s32.totalorder %s90, %s106
    %p108 = scmp.eq.s32.totalorder %s19, 0
    %p109 = por %p107, %p108
    %s110 = ssub.s32 %s20, %s32
    %p111 = scmp.eq.s32.totalorder %s110, 0
    %s113 = sadd.s32 %s112, 1
    %s114 = scalar_select %p111, %s112, %s113
    %p117 = pneg %p111
    %p118 = scmp.eq.s32.totalorder %s13, 1
    %p119 = por %p117, %p118
    %p120 = scmp.ne.s32.totalorder %s112, %s115
    %p121 = scmp.eq.s32.totalorder %s13, 0
    %p122 = por %p120, %p121
    %p123 = scmp.ne.s32.totalorder %s112, %s115
    %p124 = scmp.eq.s32.totalorder %s18, 1
    %p125 = por %p123, %p124
    %p126 = scmp.ne.s32.totalorder %s115, %s116
    %p127 = scmp.eq.s32.totalorder %s18, 0
    %p128 = por %p126, %p127
    %p129 = scmp.ne.s32.totalorder %s115, %s116
    %p130 = scmp.eq.s32.totalorder %s19, 1
    %p131 = por %p129, %p130
    %p133 = scmp.ne.s32.totalorder %s116, %s132
    %p134 = scmp.eq.s32.totalorder %s19, 0
    %p135 = por %p133, %p134
    %s136 = ssub.s32 %s20, %s32
    %p137 = scmp.eq.s32.totalorder %s136, 0
    %s139 = sadd.s32 %s138, 1
    %s140 = scalar_select %p137, %s138, %s139
    %p143 = pneg %p137
    %p144 = scmp.eq.s32.totalorder %s13, 1
    %p145 = por %p143, %p144
    %p146 = scmp.ne.s32.totalorder %s138, %s141
    %p147 = scmp.eq.s32.totalorder %s13, 0
    %p148 = por %p146, %p147
    %p149 = scmp.ne.s32.totalorder %s138, %s141
    %p150 = scmp.eq.s32.totalorder %s18, 1
    %p151 = por %p149, %p150
    %p152 = scmp.ne.s32.totalorder %s141, %s142
    %p153 = scmp.eq.s32.totalorder %s18, 0
    %p154 = por %p152, %p153
    %p155 = scmp.ne.s32.totalorder %s141, %s142
    %p156 = scmp.eq.s32.totalorder %s19, 1
    %p157 = por %p155, %p156
    %p159 = scmp.ne.s32.totalorder %s142, %s158
    %p160 = scmp.eq.s32.totalorder %s19, 0
    %p161 = por %p159, %p160
    %s162 = ssub.s32 %s20, %s32
    %p163 = scmp.eq.s32.totalorder %s162, 0
    %s165 = sadd.s32 %s164, 1
    %s166 = scalar_select %p163, %s164, %s165
    %p169 = pneg %p163
    %p170 = scmp.eq.s32.totalorder %s13, 1
    %p171 = por %p169, %p170
    %p172 = scmp.ne.s32.totalorder %s164, %s167
    %p173 = scmp.eq.s32.totalorder %s13, 0
    %p174 = por %p172, %p173
    %p175 = scmp.ne.s32.totalorder %s164, %s167
    %p176 = scmp.eq.s32.totalorder %s18, 1
    %p177 = por %p175, %p176
    %p178 = scmp.ne.s32.totalorder %s167, %s168
    %p179 = scmp.eq.s32.totalorder %s18, 0
    %p180 = por %p178, %p179
    %p181 = scmp.ne.s32.totalorder %s167, %s168
    %p182 = scmp.eq.s32.totalorder %s19, 1
    %p183 = por %p181, %p182
    %p185 = scmp.ne.s32.totalorder %s168, %s184
    %p186 = scmp.eq.s32.totalorder %s19, 0
    %p187 = por %p185, %p186
    %p188 = scmp.le.s32.totalorder 1, %s13
    %p189 = scmp.lt.s32.totalorder %s13, 3
    %p190 = pnand %p188, %p189
    %p191 = pneg %p190
    // Predicated region
    $region9: #{nmse_loss.1} parent=5 // pred_check
      _
    $region10: #{nmse_loss.1} parent=5 // pred_check_branch
      %193 = sbr.rel (%p190) target = $region12
    $region11: #{nmse_loss.1} parent=5 // pred_region
      %s194 = ssub.s32 %s13, 1
      // Predicated region
      $region13: #{nmse_loss.1} parent=11 // pred_check
        %p195 = pneg %p46
      $region14: #{nmse_loss.1} parent=11 // pred_check_branch
        %197 = sbr.rel (%p195) target = $region16
      $region15: #{nmse_loss.1} parent=11 // pred_region
        _
      $region16: #{nmse_loss.1} parent=11 // pred_fallthru
        _
    $region12: #{nmse_loss.1} parent=5 // pred_fallthru
      _
    %p198 = scmp.lt.s32.totalorder %s13, 2
    // Predicated region
    $region17: #{nmse_loss.1} parent=5 // pred_check
      %p199 = pneg %p198
    $region18: #{nmse_loss.1} parent=5 // pred_check_branch
      %201 = sbr.rel (%p199) target = $region20
    $region19: #{nmse_loss.1} parent=5 // pred_region
      // Predicated region
      $region21: #{nmse_loss.1} parent=19 // pred_check
        %p202 = pneg %p68
      $region22: #{nmse_loss.1} parent=19 // pred_check_branch
        %204 = sbr.rel (%p202) target = $region24
      $region23: #{nmse_loss.1} parent=19 // pred_region
        %p205 = scmp.lt.s32.totalorder %s20, 1
        %s206 = scalar_select %p205, %s20, 1
        %p207 = scmp.lt.s32.totalorder %s21, 0
        %s208 = scalar_select %p207, %s21, 0
        %s209 = sadd.s32 %s208, %s206
        %s210 = smul.addr %s209, 8
        %s211 = scalar_lea.vmem %s1, %s210
      $region24: #{nmse_loss.1} parent=19 // pred_fallthru
        _
      // Predicated region
      $region25: #{nmse_loss.1} parent=19 // pred_check
        %p212 = pneg %p96
      $region26: #{nmse_loss.1} parent=19 // pred_check_branch
        %214 = sbr.rel (%p212) target = $region28
      $region27: #{nmse_loss.1} parent=19 // pred_region
        %p215 = scmp.lt.s32.totalorder %s20, 1
        %s216 = scalar_select %p215, %s20, 1
        %p217 = scmp.lt.s32.totalorder %s21, 0
        %s218 = scalar_select %p217, %s21, 0
        %s219 = sadd.s32 %s218, %s216
        %s220 = smul.addr %s219, 8
        %s221 = scalar_lea.vmem %s2, %s220
      $region28: #{nmse_loss.1} parent=19 // pred_fallthru
        _
    $region20: #{nmse_loss.1} parent=5 // pred_fallthru
      _
    %p222 = scmp.le.s32.totalorder 1, %s13
    %p223 = scmp.lt.s32.totalorder %s13, 3
    %p224 = pnand %p222, %p223
    %p225 = pneg %p224
    // Predicated region
    $region29: #{nmse_loss.1} parent=5 // pred_check
      _
    $region30: #{nmse_loss.1} parent=5 // pred_check_branch
      %227 = sbr.rel (%p224) target = $region32
    $region31: #{nmse_loss.1} parent=5 // pred_region
      %s228 = ssub.s32 %s13, 1
      %p229 = pneg %p46
      %p230 = pneg %p43
      %p231 = scmp.lt.s32.totalorder %s22, 1
      %s232 = scalar_select %p231, %s22, 1
      %p233 = scmp.lt.s32.totalorder %s23, 0
      %s234 = scalar_select %p233, %s23, 0
      %s235 = sadd.s32 %s234, %s232
      %s236 = smul.addr %s235, 8
      %s237 = scalar_lea.vmem %s1, %s236
      %p238 = pneg %p74
      %p239 = pneg %p71
      %p240 = scmp.lt.s32.totalorder %s22, 1
      %s241 = scalar_select %p240, %s22, 1
      %p242 = scmp.lt.s32.totalorder %s23, 0
      %s243 = scalar_select %p242, %s23, 0
      %s244 = sadd.s32 %s243, %s241
      %s245 = smul.addr %s244, 8
      %s246 = scalar_lea.vmem %s2, %s245
      %p247 = pneg %p102
      %p248 = pneg %p99
      %p249 = pneg %p128
      %p250 = pneg %p125
      %p251 = scmp.lt.s32.totalorder %s22, 1
      %s252 = scalar_select %p251, %s22, 1
      %s253 = smul.addr %s252, 8
      %s254 = scalar_lea.vmem %s3, %s253
      %p255 = pneg %p154
      %p256 = pneg %p151
      %p257 = scmp.lt.s32.totalorder %s22, 1
      %s258 = scalar_select %p257, %s22, 1
      %s259 = smul.addr %s258, 8
      %s260 = scalar_lea.vmem %s4, %s259
      %p261 = pneg %p180
      %p262 = pneg %p177
      %p263 = scmp.lt.s32.totalorder %s22, 1
      %s264 = scalar_select %p263, %s22, 1
      %s265 = smul.addr %s264, 8
      %s266 = scalar_lea.vmem %s5, %s265
      %p267 = scmp.lt.s32.totalorder %s22, 1
      %s268 = scalar_select %p267, %s22, 1
      %p269 = scmp.lt.s32.totalorder %s23, 0
      %s270 = scalar_select %p269, %s23, 0
      %s271 = sadd.s32 %s270, %s268
      %s272 = smul.addr %s271, 8
      %s273 = scalar_lea.vmem %s1, %s272
      %p274 = scmp.lt.s32.totalorder %s22, 1
      %s275 = scalar_select %p274, %s22, 1
      %p276 = scmp.lt.s32.totalorder %s23, 0
      %s277 = scalar_select %p276, %s23, 0
      %s278 = sadd.s32 %s277, %s275
      %s279 = smul.addr %s278, 8
      %s280 = scalar_lea.vmem %s2, %s279
      %p281 = scmp.lt.s32.totalorder %s22, 1
      %s282 = scalar_select %p281, %s22, 1
      %s283 = smul.addr %s282, 8
      %s284 = scalar_lea.vmem %s3, %s283
      %p285 = scmp.lt.s32.totalorder %s22, 1
      %s286 = scalar_select %p285, %s22, 1
      %s287 = smul.addr %s286, 8
      %s288 = scalar_lea.vmem %s4, %s287
      %p289 = scmp.lt.s32.totalorder %s22, 1
      %s290 = scalar_select %p289, %s22, 1
      %s291 = smul.addr %s290, 8
      %s292 = scalar_lea.vmem %s5, %s291
      %p293 = scmp.eq.s32.totalorder %s23, 0
      // Predicated region
      $region33: #{nmse_loss.1} parent=31 // pred_check
        %p294 = pneg %p293
      $region34: #{nmse_loss.1} parent=31 // pred_check_branch
        %296 = sbr.rel (%p294) target = $region36
      $region35: #{nmse_loss.1} parent=31 // pred_region
        %297 = vst [vmem:[%s284] sm:$0xff] 0.0
        %298 = vst [vmem:[%s288] sm:$0xff] 0.0
        %299 = vst [vmem:[%s292] sm:$0xff] 0.0
      $region36: #{nmse_loss.1} parent=31 // pred_fallthru
        _
      %s300 = sld [smem:[#allocation2]]
      %v301 = vld [vmem:[%s273] sm:$0xff]
      %v302 = vld [vmem:[%s280] sm:$0xff]
      %v303 = vsub.f32 %v301, %v302
      %v304 = vstv %s300
      %v305 = vsub.f32 %v302, %v304
      %v306 = vmul.f32 %v303, %v303
      %v307 = vmul.f32 %v305, %v305
      %v308 = vld [vmem:[%s284] sm:$0xff]
      %v309 = vadd.f32 %v308, %v306
      %310 = vst [vmem:[%s284] sm:$0xff] %v309
      %v311 = vld [vmem:[%s288] sm:$0xff]
      %v312 = vadd.f32 %v311, %v305
      %313 = vst [vmem:[%s288] sm:$0xff] %v312
      %v314 = vld [vmem:[%s292] sm:$0xff]
      %v315 = vadd.f32 %v314, %v307
      %316 = vst [vmem:[%s292] sm:$0xff] %v315
      %p317 = scmp.lt.s32.totalorder %s22, 1
      %s318 = scalar_select %p317, %s22, 1
      %s319 = smul.addr %s318, 8
      %s320 = scalar_lea.vmem %s3, %s319
      %p321 = scmp.lt.s32.totalorder %s22, 1
      %s322 = scalar_select %p321, %s22, 1
      %s323 = smul.addr %s322, 8
      %s324 = scalar_lea.vmem %s4, %s323
      %p325 = scmp.lt.s32.totalorder %s22, 1
      %s326 = scalar_select %p325, %s22, 1
      %s327 = smul.addr %s326, 8
      %s328 = scalar_lea.vmem %s5, %s327
      // Predicated region
      $region37: #{nmse_loss.1} parent=31 // pred_check
        %p329 = pneg %p125
      $region38: #{nmse_loss.1} parent=31 // pred_check_branch
        %331 = sbr.rel (%p329) target = $region40
      $region39: #{nmse_loss.1} parent=31 // pred_region
        _
      $region40: #{nmse_loss.1} parent=31 // pred_fallthru
        _
      // Predicated region
      $region41: #{nmse_loss.1} parent=31 // pred_check
        %p332 = pneg %p151
      $region42: #{nmse_loss.1} parent=31 // pred_check_branch
        %334 = sbr.rel (%p332) target = $region44
      $region43: #{nmse_loss.1} parent=31 // pred_region
        _
      $region44: #{nmse_loss.1} parent=31 // pred_fallthru
        _
      // Predicated region
      $region45: #{nmse_loss.1} parent=31 // pred_check
        %p335 = pneg %p177
      $region46: #{nmse_loss.1} parent=31 // pred_check_branch
        %337 = sbr.rel (%p335) target = $region48
      $region47: #{nmse_loss.1} parent=31 // pred_region
        _
      $region48: #{nmse_loss.1} parent=31 // pred_fallthru
        _
    $region32: #{nmse_loss.1} parent=5 // pred_fallthru
      _
    %p338 = scmp.le.s32.totalorder 2, %s13
    // Predicated region
    $region49: #{nmse_loss.1} parent=5 // pred_check
      %p339 = pneg %p338
    $region50: #{nmse_loss.1} parent=5 // pred_check_branch
      %341 = sbr.rel (%p339) target = $region52
    $region51: #{nmse_loss.1} parent=5 // pred_region
      %s342 = ssub.s32 %s13, 2
      // Predicated region
      $region53: #{nmse_loss.1} parent=51 // pred_check
        %p343 = pneg %p131
      $region54: #{nmse_loss.1} parent=51 // pred_check_branch
        %345 = sbr.rel (%p343) target = $region56
      $region55: #{nmse_loss.1} parent=51 // pred_region
        %p346 = scmp.lt.s32.totalorder %s24, 1
        %s347 = scalar_select %p346, %s24, 1
        %s348 = smul.addr %s347, 8
        %s349 = scalar_lea.vmem %s3, %s348
      $region56: #{nmse_loss.1} parent=51 // pred_fallthru
        _
      // Predicated region
      $region57: #{nmse_loss.1} parent=51 // pred_check
        %p350 = pneg %p157
      $region58: #{nmse_loss.1} parent=51 // pred_check_branch
        %352 = sbr.rel (%p350) target = $region60
      $region59: #{nmse_loss.1} parent=51 // pred_region
        %p353 = scmp.lt.s32.totalorder %s24, 1
        %s354 = scalar_select %p353, %s24, 1
        %s355 = smul.addr %s354, 8
        %s356 = scalar_lea.vmem %s4, %s355
      $region60: #{nmse_loss.1} parent=51 // pred_fallthru
        _
      // Predicated region
      $region61: #{nmse_loss.1} parent=51 // pred_check
        %p357 = pneg %p183
      $region62: #{nmse_loss.1} parent=51 // pred_check_branch
        %359 = sbr.rel (%p357) target = $region64
      $region63: #{nmse_loss.1} parent=51 // pred_region
        %p360 = scmp.lt.s32.totalorder %s24, 1
        %s361 = scalar_select %p360, %s24, 1
        %s362 = smul.addr %s361, 8
        %s363 = scalar_lea.vmem %s5, %s362
      $region64: #{nmse_loss.1} parent=51 // pred_fallthru
        _
    $region52: #{nmse_loss.1} parent=5 // pred_fallthru
      _
  $region6: #{nmse_loss.1} parent=0 // loop_footer
    %s17 = sadd.s32 1, %s13
  $region7: #{nmse_loss.1} parent=0 // loop_footer_branch
    %12 = sbr.rel target = $region3
  $region8: #{nmse_loss.1} parent=0 // loop_exit
    _

</llo_original>
